<compile_context>
chip_gen: v7x
topology: tpu7x:2x2x1
jax: 0.10.0
libtpu: 0.0.40
codegen_flags: <defaults>
</compile_context>

<pallas_src>
import functools

import jax
import jax.numpy as jnp
from jax import lax
from jax.experimental import pallas as pl
from jax.experimental.pallas import tpu as pltpu


def _mha_kernel(x_ref, wqkv_ref, bqkv_ref, wo_ref, bo_ref, o_ref,
                *, d_k: int, scale: float):
    Bt, S, F = x_ref.shape

    # (Bt, S, F) -> (Bt*S, F): sublane merge only (S is a multiple of 8),
    # layout preserving.  Cast to bf16 in-kernel (VPU, hidden under MXU).
    x2d = x_ref[...].reshape(Bt * S, F).astype(jnp.bfloat16)

    # One fused QKV matmul on the whole row slab; f32 accumulate + f32 bias.
    qkv = jnp.dot(x2d, wqkv_ref[...],
                  preferred_element_type=jnp.float32) + bqkv_ref[...]   # (Bt*S, 3*d_k) f32

    # Fold 1/sqrt(d_k) into q (O(S*d_k) multiplies instead of O(S^2)),
    # then cast q/k/v to bf16 so every MXU input is bf16.
    q = (qkv[:, 0 * d_k:1 * d_k] * scale).astype(jnp.bfloat16).reshape(Bt, S, d_k)
    k = qkv[:, 1 * d_k:2 * d_k].astype(jnp.bfloat16).reshape(Bt, S, d_k)
    v = qkv[:, 2 * d_k:3 * d_k].astype(jnp.bfloat16).reshape(Bt, S, d_k)

    # scores (Bt, Sq, Sk): contract on d_k, batch on Bt -- no explicit k.T.
    scores = lax.dot_general(
        q, k, dimension_numbers=(((2,), (2,)), ((0,), (0,))),
        preferred_element_type=jnp.float32)

    # softmax over axis=-2 (the *query* axis), exactly as torch.softmax(dim=-2)
    m = jnp.max(scores, axis=1, keepdims=True)
    e = jnp.exp(scores - m)                                   # f32 exp (EUP)
    denom = jnp.sum(e, axis=1, keepdims=True)
    p = e * pl.reciprocal(denom, approx=True)                 # EUP, f32

    # ctx (Bt, Sq, d_k): bf16 MXU inputs, f32 accumulation.
    ctx = lax.dot_general(
        p.astype(jnp.bfloat16), v,
        dimension_numbers=(((2,), (1,)), ((0,), (0,))),
        preferred_element_type=jnp.float32)

    ctx2d = ctx.reshape(Bt * S, d_k).astype(jnp.bfloat16)
    out = jnp.dot(ctx2d, wo_ref[...],
                  preferred_element_type=jnp.float32) + bo_ref[...]     # (Bt*S, F) f32

    o_ref[...] = out.reshape(Bt, S, F).astype(o_ref.dtype)


def prepare_params(params):
    """One-time param prep: fuse Q/K/V weights and cast MXU operands to bf16.

    Keeping this off the per-call path avoids re-materializing the fused
    weights in HBM on every forward call.
    """
    wqkv = jnp.concatenate([params["wq"], params["wk"], params["wv"]],
                           axis=1).astype(jnp.bfloat16)          # (F, 3*d_k) bf16
    bqkv = jnp.concatenate([params["bq"], params["bk"], params["bv"]],
                           axis=1)                               # (1, 3*d_k) f32
    wo = params["wo"].astype(jnp.bfloat16)                       # (d_k, F) bf16
    bo = params["bo"]                                            # (1, F)   f32
    return dict(wqkv=wqkv, bqkv=bqkv, wo=wo, bo=bo)


def multihead_attention(x, fused_params, *, d_k: int, nheads: int, block_b=None):
    """x: (B, S, F) float32. fused_params: output of prepare_params()."""
    assert d_k % nheads == 0, "KVS dimension should be divisible by number of attention heads"
    B, S, F = x.shape

    # Single grid step by default: the grid is a serial loop on one
    # TensorCore, so splitting tiny batches only adds per-step overhead and
    # starves the MXU M dimension.  block_b can still be overridden when B*S
    # grows beyond the VMEM budget (re-derive per generation, esp. v7x 64 MiB).
    if block_b is None:
        block_b = B
    assert B % block_b == 0

    wqkv, bqkv, wo, bo = (fused_params["wqkv"], fused_params["bqkv"],
                          fused_params["wo"], fused_params["bo"])

    full = lambda shape: pl.BlockSpec(shape, lambda b: (0,) * len(shape))

    kernel = functools.partial(_mha_kernel, d_k=d_k, scale=1.0 / (d_k ** 0.5))
    return pl.pallas_call(
        kernel,
        out_shape=jax.ShapeDtypeStruct((B, S, F), x.dtype),
        grid_spec=pltpu.PrefetchScalarGridSpec(
            num_scalar_prefetch=0,
            grid=(B // block_b,),
            in_specs=[
                pl.BlockSpec((block_b, S, F), lambda b: (b, 0, 0)),  # x (f32)
                full((F, 3 * d_k)), full((1, 3 * d_k)),              # Wqkv (bf16), bqkv (f32)
                full((d_k, F)), full((1, F)),                        # Wo (bf16), bo (f32)
            ],
            out_specs=pl.BlockSpec((block_b, S, F), lambda b: (b, 0, 0)),
        ),
        compiler_params=pltpu.CompilerParams(
            dimension_semantics=("arbitrary",),
            vmem_limit_bytes=32 * 1024 * 1024,
        ),
    )(x, wqkv, bqkv, wo, bo)


def _reference(x, params, d_k):
    """Pure-JAX reference mirroring the kernel's bf16-MXU / f32-accumulate math."""
    xb = x.astype(jnp.bfloat16)
    wq = params["wq"].astype(jnp.bfloat16)
    wk = params["wk"].astype(jnp.bfloat16)
    wv = params["wv"].astype(jnp.bfloat16)
    wo = params["wo"].astype(jnp.bfloat16)

    q = jnp.dot(xb, wq, preferred_element_type=jnp.float32) + params["bq"][0]
    k = jnp.dot(xb, wk, preferred_element_type=jnp.float32) + params["bk"][0]
    v = jnp.dot(xb, wv, preferred_element_type=jnp.float32) + params["bv"][0]

    qb = (q / (d_k ** 0.5)).astype(jnp.bfloat16)
    kb = k.astype(jnp.bfloat16)
    scores = jnp.einsum("bqd,bkd->bqk", qb, kb, preferred_element_type=jnp.float32)
    p = jax.nn.softmax(scores, axis=-2)     # over the query axis, as in torch
    ctx = jnp.einsum("bqk,bkd->bqd", p.astype(jnp.bfloat16), v.astype(jnp.bfloat16),
                     preferred_element_type=jnp.float32)
    return jnp.dot(ctx.astype(jnp.bfloat16), wo,
                   preferred_element_type=jnp.float32) + params["bo"][0]


def _init_params(key, input_size, d_k):
    ks = jax.random.split(key, 8)

    def lin(kw, kb, fan_in, fan_out):
        bound = 1.0 / (fan_in ** 0.5)
        w = jax.random.uniform(kw, (fan_in, fan_out), jnp.float32, -bound, bound)
        b = jax.random.uniform(kb, (1, fan_out), jnp.float32, -bound, bound)
        return w, b

    wq, bq = lin(ks[0], ks[1], input_size, d_k)
    wk, bk = lin(ks[2], ks[3], input_size, d_k)
    wv, bv = lin(ks[4], ks[5], input_size, d_k)
    wo, bo = lin(ks[6], ks[7], d_k, input_size)
    return dict(wq=wq, bq=bq, wk=wk, bk=bk, wv=wv, bv=bv, wo=wo, bo=bo)


if __name__ == "__main__":
    B, S, F = 2, 8, 32        # batch, sequence, feature (input_size)
    d_k, nheads = 16, 4

    key = jax.random.PRNGKey(0)
    kx, kp = jax.random.split(key)
    x = jax.random.normal(kx, (B, S, F), jnp.float32)
    params = _init_params(kp, F, d_k)

    fused = prepare_params(params)            # one-time prep, off the call path
    fused = jax.tree_util.tree_map(jax.block_until_ready, fused)

    out = multihead_attention(x, fused, d_k=d_k, nheads=nheads)
    out = jax.block_until_ready(out)

    ref = _reference(x, params, d_k)
    assert out.shape == (B, S, F)
    max_err = float(jnp.max(jnp.abs(out - ref)))
    assert jnp.allclose(out, ref, atol=2e-2, rtol=2e-2), f"mismatch vs reference (max err {max_err})"
    print("KERNEL_OK")
</pallas_src>

<mosaic_0001>
module attributes {stable_mosaic.version = 11 : i64} {
  func.func @_mha_kernel(%arg0: i32, %arg1: memref<2x8x32xf32, #tpu.memory_space<vmem>>, %arg2: memref<32x48xbf16, #tpu.memory_space<vmem>>, %arg3: memref<1x48xf32, #tpu.memory_space<vmem>>, %arg4: memref<16x32xbf16, #tpu.memory_space<vmem>>, %arg5: memref<1x32xf32, #tpu.memory_space<vmem>>, %arg6: memref<2x8x32xf32, #tpu.memory_space<vmem>>) attributes {dimension_semantics = [#tpu.dimension_semantics<arbitrary>], iteration_bounds = array<i64: 1>, scalar_prefetch = 0 : i64, scratch_operands = 0 : i64, tpu.core_type = #tpu.core_type<tc>, window_params = [{transform_indices = @transform_0, window_bounds = array<i64: 2, 8, 32>}, {pipeline_mode = #tpu.pipeline_mode<synchronous>, transform_indices = @transform_1, window_bounds = array<i64: 32, 48>}, {pipeline_mode = #tpu.pipeline_mode<synchronous>, transform_indices = @transform_2, window_bounds = array<i64: 1, 48>}, {pipeline_mode = #tpu.pipeline_mode<synchronous>, transform_indices = @transform_3, window_bounds = array<i64: 16, 32>}, {pipeline_mode = #tpu.pipeline_mode<synchronous>, transform_indices = @transform_4, window_bounds = array<i64: 1, 32>}, {transform_indices = @transform_5, window_bounds = array<i64: 2, 8, 32>}]} {
    %c0 = arith.constant 0 : index
    %c0_0 = arith.constant 0 : index
    %c0_1 = arith.constant 0 : index
    %0 = vector.load %arg1[%c0, %c0_0, %c0_1] : memref<2x8x32xf32, #tpu.memory_space<vmem>>, vector<2x8x32xf32>
    %1 = vector.shape_cast %0 : vector<2x8x32xf32> to vector<16x32xf32>
    %2 = arith.truncf %1 : vector<16x32xf32> to vector<16x32xbf16>
    %c0_2 = arith.constant 0 : index
    %c0_3 = arith.constant 0 : index
    %3 = vector.load %arg2[%c0_2, %c0_3] : memref<32x48xbf16, #tpu.memory_space<vmem>>, vector<32x48xbf16>
    %cst = arith.constant dense<0.000000e+00> : vector<16x48xf32>
    %4 = tpu.matmul %2, %3, %cst {dimension_numbers = #tpu.dot_dimension_numbers<[1], [0], [0], [1], [0, 0, 1, 1], [], []>} : vector<16x32xbf16>, vector<32x48xbf16>, vector<16x48xf32> -> vector<16x48xf32>
    %c0_4 = arith.constant 0 : index
    %c0_5 = arith.constant 0 : index
    %5 = vector.load %arg3[%c0_4, %c0_5] : memref<1x48xf32, #tpu.memory_space<vmem>>, vector<1x48xf32>
    %6 = vector.broadcast %5 : vector<1x48xf32> to vector<16x48xf32>
    %7 = arith.addf %4, %6 : vector<16x48xf32>
    %8 = vector.extract_strided_slice %7 {offsets = [0, 0], sizes = [16, 16], strides = [1, 1]} : vector<16x48xf32> to vector<16x16xf32>
    %cst_6 = arith.constant 2.500000e-01 : f32
    %9 = vector.broadcast %cst_6 : f32 to vector<16x16xf32>
    %10 = arith.mulf %8, %9 : vector<16x16xf32>
    %11 = arith.truncf %10 : vector<16x16xf32> to vector<16x16xbf16>
    %12 = vector.shape_cast %11 : vector<16x16xbf16> to vector<2x8x16xbf16>
    %13 = vector.extract_strided_slice %7 {offsets = [0, 16], sizes = [16, 16], strides = [1, 1]} : vector<16x48xf32> to vector<16x16xf32>
    %14 = arith.truncf %13 : vector<16x16xf32> to vector<16x16xbf16>
    %15 = vector.shape_cast %14 : vector<16x16xbf16> to vector<2x8x16xbf16>
    %16 = vector.extract_strided_slice %7 {offsets = [0, 32], sizes = [16, 16], strides = [1, 1]} : vector<16x48xf32> to vector<16x16xf32>
    %17 = arith.truncf %16 : vector<16x16xf32> to vector<16x16xbf16>
    %18 = vector.shape_cast %17 : vector<16x16xbf16> to vector<2x8x16xbf16>
    %cst_7 = arith.constant dense<0.000000e+00> : vector<2x8x8xf32>
    %19 = tpu.matmul %12, %15, %cst_7 {dimension_numbers = #tpu.dot_dimension_numbers<[2], [2], [1], [1], [0, 0, 0, 1, 1, 1], [0], [0]>} : vector<2x8x16xbf16>, vector<2x8x16xbf16>, vector<2x8x8xf32> -> vector<2x8x8xf32>
    %cst_8 = arith.constant dense<0xFF800000> : vector<2x8xf32>
    %20 = vector.multi_reduction <maximumf>, %19, %cst_8 [1] : vector<2x8x8xf32> to vector<2x8xf32>
    %21 = vector.shape_cast %20 : vector<2x8xf32> to vector<2x1x8xf32>
    %22 = vector.broadcast %21 : vector<2x1x8xf32> to vector<2x8x8xf32>
    %23 = arith.subf %19, %22 : vector<2x8x8xf32>
    %24 = math.exp %23 : vector<2x8x8xf32>
    %cst_9 = arith.constant dense<0.000000e+00> : vector<2x8xf32>
    %25 = vector.multi_reduction <add>, %24, %cst_9 [1] : vector<2x8x8xf32> to vector<2x8xf32>
    %26 = vector.shape_cast %25 : vector<2x8xf32> to vector<2x1x8xf32>
    %27 = tpu.reciprocal %26 {approx = true} : vector<2x1x8xf32> -> vector<2x1x8xf32>
    %28 = vector.broadcast %27 : vector<2x1x8xf32> to vector<2x8x8xf32>
    %29 = arith.mulf %24, %28 : vector<2x8x8xf32>
    %30 = arith.truncf %29 : vector<2x8x8xf32> to vector<2x8x8xbf16>
    %cst_10 = arith.constant dense<0.000000e+00> : vector<2x8x16xf32>
    %31 = tpu.matmul %30, %18, %cst_10 {dimension_numbers = #tpu.dot_dimension_numbers<[2], [1], [1], [2], [0, 0, 0, 1, 1, 2], [0], [0]>} : vector<2x8x8xbf16>, vector<2x8x16xbf16>, vector<2x8x16xf32> -> vector<2x8x16xf32>
    %32 = vector.shape_cast %31 : vector<2x8x16xf32> to vector<16x16xf32>
    %33 = arith.truncf %32 : vector<16x16xf32> to vector<16x16xbf16>
    %c0_11 = arith.constant 0 : index
    %c0_12 = arith.constant 0 : index
    %34 = vector.load %arg4[%c0_11, %c0_12] : memref<16x32xbf16, #tpu.memory_space<vmem>>, vector<16x32xbf16>
    %cst_13 = arith.constant dense<0.000000e+00> : vector<16x32xf32>
    %35 = tpu.matmul %33, %34, %cst_13 {dimension_numbers = #tpu.dot_dimension_numbers<[1], [0], [0], [1], [0, 0, 1, 1], [], []>} : vector<16x16xbf16>, vector<16x32xbf16>, vector<16x32xf32> -> vector<16x32xf32>
    %c0_14 = arith.constant 0 : index
    %c0_15 = arith.constant 0 : index
    %36 = vector.load %arg5[%c0_14, %c0_15] : memref<1x32xf32, #tpu.memory_space<vmem>>, vector<1x32xf32>
    %37 = vector.broadcast %36 : vector<1x32xf32> to vector<16x32xf32>
    %38 = arith.addf %35, %37 : vector<16x32xf32>
    %39 = vector.shape_cast %38 : vector<16x32xf32> to vector<2x8x32xf32>
    %c0_16 = arith.constant 0 : index
    %c0_17 = arith.constant 0 : index
    %c0_18 = arith.constant 0 : index
    %40 = vector.load %arg6[%c0_16, %c0_17, %c0_18] : memref<2x8x32xf32, #tpu.memory_space<vmem>>, vector<2x8x32xf32>
    tpu.vector_store %arg6[%c0_16, %c0_17, %c0_18], %39 {strides = array<i32>} : memref<2x8x32xf32, #tpu.memory_space<vmem>>, vector<2x8x32xf32>,
    return
  }
  func.func @transform_0(%arg0: i32) -> (i32, i32, i32) {
    %c0_i32 = arith.constant 0 : i32
    %c0_i32_0 = arith.constant 0 : i32
    %c0_i32_1 = arith.constant 0 : i32
    return %arg0, %c0_i32, %c0_i32_0 : i32, i32, i32
  }
  func.func @transform_1(%arg0: i32) -> (i32, i32) {
    %c0_i32 = arith.constant 0 : i32
    %c0_i32_0 = arith.constant 0 : i32
    %c0_i32_1 = arith.constant 0 : i32
    return %c0_i32, %c0_i32_0 : i32, i32
  }
  func.func @transform_2(%arg0: i32) -> (i32, i32) {
    %c0_i32 = arith.constant 0 : i32
    %c0_i32_0 = arith.constant 0 : i32
    %c0_i32_1 = arith.constant 0 : i32
    return %c0_i32, %c0_i32_0 : i32, i32
  }
  func.func @transform_3(%arg0: i32) -> (i32, i32) {
    %c0_i32 = arith.constant 0 : i32
    %c0_i32_0 = arith.constant 0 : i32
    %c0_i32_1 = arith.constant 0 : i32
    return %c0_i32, %c0_i32_0 : i32, i32
  }
  func.func @transform_4(%arg0: i32) -> (i32, i32) {
    %c0_i32 = arith.constant 0 : i32
    %c0_i32_0 = arith.constant 0 : i32
    %c0_i32_1 = arith.constant 0 : i32
    return %c0_i32, %c0_i32_0 : i32, i32
  }
  func.func @transform_5(%arg0: i32) -> (i32, i32, i32) {
    %c0_i32 = arith.constant 0 : i32
    %c0_i32_0 = arith.constant 0 : i32
    %c0_i32_1 = arith.constant 0 : i32
    return %arg0, %c0_i32, %c0_i32_0 : i32, i32, i32
  }
}

</mosaic_0001>

<llo_original>
// kernel: tpu_custom_call.1
$region0: #{tpu_custom_call.1}
  #allocation0 [shape = 'u32[]', space=smem, size = 0x4, offset = 0x4, fixed_abs, tag = 'smem constant byte address 0x4 - core index']
  #allocation1 [shape = 'u32[144,128]{1,0:T(1,128)}', space=vmem, size = 0x12000, scoped, tag = 'internal scratch']
  %s0 = inlined_call_operand.hbm [shape: f32[2,8,32], index: 0, kind: input, shape index: {}]
  %s1 = inlined_call_operand.hbm [shape: bf16[32,48], index: 1, kind: input, shape index: {}]
  %s2 = inlined_call_operand.vmem [shape: f32[1,48], index: 2, kind: input, shape index: {}]
  %s3 = inlined_call_operand.vmem [shape: bf16[16,32], index: 3, kind: input, shape index: {}]
  %s4 = inlined_call_operand.vmem [shape: f32[1,32], index: 4, kind: input, shape index: {}]
  %s5 = inlined_call_operand.hbm [shape: f32[2,8,32], index: 5, kind: output, shape index: {}]
  %s6 = sld [smem:[#allocation0]]
  $region38: #{tpu_custom_call.1} parent=0
    _
  %s8 = ssub.s32 1, %s6
  %s9 = scalar_select 0, %s8, %s6
  $region1: #{tpu_custom_call.1} parent=0
    #allocation2 [shape = 'u8[8192]{0}', space=vmem, size = 0x2000, scoped, tag = 'input window, operand 0, single buffered']
    #allocation3 [shape = 's32[1]{0}', space=sflag, size = 0x4, scoped, tag = 'scoped memory for tpu_custom_call.1']
    #allocation4 [shape = 's32[1]{0}', space=sflag, size = 0x4, scoped, tag = 'scoped memory for tpu_custom_call.1']
    #allocation5 [shape = 'u8[8192]{0}', space=vmem, size = 0x2000, scoped, tag = 'input window, operand 1, single buffered']
    #allocation6 [shape = 's32[1]{0}', space=sflag, size = 0x4, scoped, tag = 'scoped memory for tpu_custom_call.1']
    #allocation7 [shape = 'u8[8192]{0}', space=vmem, size = 0x2000, scoped, tag = 'output window, operand 0, single buffered']
    %10 = vsyncpa [#allocation3], 0
    %11 = vsyncpa [#allocation6], 0
    %12 = vsyncpa [#allocation4], 0
    // Predicated region
    $region2: #{tpu_custom_call.1} parent=1 // pred_check
      _
    $region3: #{tpu_custom_call.1} parent=1 // pred_check_branch
      %14 = sbr.rel (0) target = $region5
    $region4: #{tpu_custom_call.1} parent=1 // pred_region
      %s16 = ssub.s32 256, 256
      %17 = vsyncadd [#allocation3], %s16
      %s18 = sshll.u32 [#allocation2], 4
      %s19 = int_to_ptr.vmem [resolvable:$true] %s18
      %24 = dma.hbm_to_vmem [thread:$0]  %s0, 256, %s19, [#allocation3], 128, 128, 8
    $region5: #{tpu_custom_call.1} parent=1 // pred_fallthru
      _
    // Predicated region
    $region6: #{tpu_custom_call.1} parent=1 // pred_check
      _
    $region7: #{tpu_custom_call.1} parent=1 // pred_check_branch
      %26 = sbr.rel (0) target = $region9
    $region8: #{tpu_custom_call.1} parent=1 // pred_region
      %s28 = ssub.s32 256, 256
      %29 = vsyncadd [#allocation6], %s28
      %s30 = sshll.u32 [#allocation5], 4
      %s31 = int_to_ptr.vmem [resolvable:$true] %s30
      %36 = dma.hbm_to_vmem [thread:$0]  %s1, 256, %s31, [#allocation6], 64, 64, 4
    $region9: #{tpu_custom_call.1} parent=1 // pred_fallthru
      _
    // Predicated region
    $region10: #{tpu_custom_call.1} parent=1 // pred_check
      _
    $region11: #{tpu_custom_call.1} parent=1 // pred_check_branch
      %38 = sbr.rel (0) target = $region13
    $region12: #{tpu_custom_call.1} parent=1 // pred_region
      _
    $region13: #{tpu_custom_call.1} parent=1 // pred_fallthru
      _
    // Predicated region
    $region14: #{tpu_custom_call.1} parent=1 // pred_check
      _
    $region15: #{tpu_custom_call.1} parent=1 // pred_check_branch
      %40 = sbr.rel (0) target = $region17
    $region16: #{tpu_custom_call.1} parent=1 // pred_region
      _
    $region17: #{tpu_custom_call.1} parent=1 // pred_fallthru
      _
    // Predicated region
    $region18: #{tpu_custom_call.1} parent=1 // pred_check
      _
    $region19: #{tpu_custom_call.1} parent=1 // pred_check_branch
      %42 = sbr.rel (0) target = $region21
    $region20: #{tpu_custom_call.1} parent=1 // pred_region
      _
    $region21: #{tpu_custom_call.1} parent=1 // pred_fallthru
      _
    // Predicated region
    $region22: #{tpu_custom_call.1} parent=1 // pred_check
      _
    $region23: #{tpu_custom_call.1} parent=1 // pred_check_branch
      %44 = sbr.rel (0) target = $region25
    $region24: #{tpu_custom_call.1} parent=1 // pred_region
      %45 = dma.done [#allocation3], 256
    $region25: #{tpu_custom_call.1} parent=1 // pred_fallthru
      _
    // Predicated region
    $region26: #{tpu_custom_call.1} parent=1 // pred_check
      _
    $region27: #{tpu_custom_call.1} parent=1 // pred_check_branch
      %47 = sbr.rel (0) target = $region29
    $region28: #{tpu_custom_call.1} parent=1 // pred_region
      %48 = dma.done [#allocation6], 256
    $region29: #{tpu_custom_call.1} parent=1 // pred_fallthru
      _
    %v50 = vld [vmem:[#allocation2] sm:$0xff]
    %v51 = vld [vmem:[#allocation2 + $0x8] sm:$0xff]
    %v52 = vpack.c.bf16 %v51, %v50
    %v53 = vld [vmem:[#allocation5] sm:$0xf]
    %v54 = vld [vmem:[#allocation5 + $0x4] sm:$0xf]
    %v55 = vld [vmem:[#allocation5 + $0x8] sm:$0xf]
    %v56 = vld [vmem:[#allocation5 + $0xc] sm:$0xf]
    %v57 = vld [vmem:[%s2] sm:$0x1]
    %v59 = vlaneseq
    %v60 = vshrl.u32 %v59, 7
    %v61 = vsub.s32 0, %v60
    %v62 = vrot.slane %v57, %v61
    %v68 = vunpack.c.l.b16 %v53
    %v69 = vunpack.c.l.b16 %v54
    %v70 = vunpack.c.l.b16 %v55
    %v71 = vunpack.c.l.b16 %v56
    %v72 = vpack.c.b16 %v69, %v68
    %v73 = vpack.c.b16 %v71, %v70
    %vm76 = vcmask 261120
    %v78 = vsel %vm76, %v52, 0
    %80 = vmatprep.subr.bf16.mxu0 0
    %81 = vmatpush1.bf16.msra.mxu0 %v72
    %82 = vmatprep.subr.bf16.mxu0 0
    %83 = vmatpush1.bf16.msra.mxu0 %v73
    %84 = vmatprep.subr.bf16.mxu0 0
    %85 = vmatpush1.bf16.msra.mxu0 0
    %86 = vmatprep.subr.bf16.mxu0 0
    %87 = vmatpush1.bf16.msra.mxu0 0
    %88 = vmatprep.subr.bf16.mxu0 0
    %89 = vmatpush1.bf16.msra.mxu0 0
    %90 = vmatprep.subr.bf16.mxu0 0
    %91 = vmatpush1.bf16.msra.mxu0 0
    %92 = vmatprep.subr.bf16.mxu0 0
    %93 = vmatpush1.bf16.msra.mxu0 0
    %94 = vmatprep.subr.bf16.mxu0 0
    %95 = vmatpush1.bf16.msra.mxu0 0
    %96 = vmatprep.subr.bf16.mxu0 0
    %97 = vmatpush1.bf16.msra.mxu0 0
    %98 = vmatprep.subr.bf16.mxu0 0
    %99 = vmatpush1.bf16.msra.mxu0 0
    %100 = vmatprep.subr.bf16.mxu0 0
    %101 = vmatpush1.bf16.msra.mxu0 0
    %102 = vmatprep.subr.bf16.mxu0 0
    %103 = vmatpush1.bf16.msra.mxu0 0
    %104 = vmatprep.subr.bf16.mxu0 0
    %105 = vmatpush1.bf16.msra.mxu0 0
    %106 = vmatprep.subr.bf16.mxu0 0
    %107 = vmatpush1.bf16.msra.mxu0 0
    %108 = vmatprep.subr.bf16.mxu0 0
    %109 = vmatpush1.bf16.msra.mxu0 0
    %110 = vmatprep.subr.bf16.mxu0 0
    %111 = vmatpush1.bf16.msra.mxu0 0
    %112 = vmatprep.mubr.bf16.mxu0 0
    %113 = vmatmul.mubr.bf16.gmra.mrb[0].mxu0 %v78
    %v114 = vpop.f32.mrb[0].mxu0
    %v115 = vadd.f32 %v62, %v114
    %v116 = vpop.f32.mrb[0].mxu0
    %v117 = vpop.f32.mrb[0].mxu0
    %v118 = vadd.f32 %v62, %v117
    %v119 = vpop.f32.mrb[0].mxu0
    %120 = vdwg.mxu0
    %v121 = vmul.f32 %v115, 0.25
    %v122 = vmul.f32 %v118, 0.25
    %v123 = vpack.c.bf16 %v122, %v121
    %v125 = vunpack.c.l.b16 %v123
    %v126 = vunpack.c.h.b16 %v123
    %v127 = vpack.c.b16 %v125, %v125
    %v128 = vpack.c.b16 %v126, %v126
    %v129 = vpack.c.bf16 %v118, %v115
    %v131 = vunpack.c.l.b16 %v129
    %v132 = vunpack.c.h.b16 %v129
    %v133 = vpack.c.b16 %v131, %v131
    %134 = vrot.lane.b32.xlu0 %v133, 112
    %v135 = vpop.permute.xlu0 %134
    %vm136 = vcmask 130048
    %v138 = vsel %vm136, %v127, 0
    %v141 = vsel %vm136, %v135, 0
    %143 = vmatprep.subr.bf16.mxu0 0
    %144 = vmatpush1.bf16.xpose.msra.mxu0 %v141
    %145 = vmatprep.subr.bf16.mxu0 0
    %146 = vmatpush1.bf16.xpose.msra.mxu0 0
    %147 = vmatprep.subr.bf16.mxu0 0
    %148 = vmatpush1.bf16.xpose.msra.mxu0 0
    %149 = vmatprep.subr.bf16.mxu0 0
    %150 = vmatpush1.bf16.xpose.msra.mxu0 0
    %151 = vmatprep.subr.bf16.mxu0 0
    %152 = vmatpush1.bf16.xpose.msra.mxu0 0
    %153 = vmatprep.subr.bf16.mxu0 0
    %154 = vmatpush1.bf16.xpose.msra.mxu0 0
    %155 = vmatprep.subr.bf16.mxu0 0
    %156 = vmatpush1.bf16.xpose.msra.mxu0 0
    %157 = vmatprep.subr.bf16.mxu0 0
    %158 = vmatpush1.bf16.xpose.msra.mxu0 0
    %159 = vmatprep.subr.bf16.mxu0 0
    %160 = vmatpush1.bf16.xpose.msra.mxu0 0
    %161 = vmatprep.subr.bf16.mxu0 0
    %162 = vmatpush1.bf16.xpose.msra.mxu0 0
    %163 = vmatprep.subr.bf16.mxu0 0
    %164 = vmatpush1.bf16.xpose.msra.mxu0 0
    %165 = vmatprep.subr.bf16.mxu0 0
    %166 = vmatpush1.bf16.xpose.msra.mxu0 0
    %167 = vmatprep.subr.bf16.mxu0 0
    %168 = vmatpush1.bf16.xpose.msra.mxu0 0
    %169 = vmatprep.subr.bf16.mxu0 0
    %170 = vmatpush1.bf16.xpose.msra.mxu0 0
    %171 = vmatprep.subr.bf16.mxu0 0
    %172 = vmatpush1.bf16.xpose.msra.mxu0 0
    %173 = vmatprep.subr.bf16.mxu0 0
    %174 = vmatpush1.bf16.xpose.msra.mxu0 0
    %175 = vmatprep.mubr.bf16.mxu0 0
    %176 = vmatmul.mubr.bf16.gmra.mrb[0].mxu0 %v138
    %v177 = vpop.f32.mrb[0].mxu0
    %v178 = vadd.f32 0.0, %v177
    %v179 = vpop.f32.mrb[0].mxu0
    %v180 = vpop.f32.mrb[0].mxu0
    %v181 = vpop.f32.mrb[0].mxu0
    %182 = vdwg.mxu0
    %v183 = vpack.c.b16 %v132, %v132
    %184 = vrot.lane.b32.xlu0 %v183, 112
    %v185 = vpop.permute.xlu0 %184
    %v187 = vsel %vm136, %v128, 0
    %v190 = vsel %vm136, %v185, 0
    %192 = vmatprep.subr.bf16.mxu0 0
    %193 = vmatpush1.bf16.xpose.msra.mxu0 %v190
    %194 = vmatprep.subr.bf16.mxu0 0
    %195 = vmatpush1.bf16.xpose.msra.mxu0 0
    %196 = vmatprep.subr.bf16.mxu0 0
    %197 = vmatpush1.bf16.xpose.msra.mxu0 0
    %198 = vmatprep.subr.bf16.mxu0 0
    %199 = vmatpush1.bf16.xpose.msra.mxu0 0
    %200 = vmatprep.subr.bf16.mxu0 0
    %201 = vmatpush1.bf16.xpose.msra.mxu0 0
    %202 = vmatprep.subr.bf16.mxu0 0
    %203 = vmatpush1.bf16.xpose.msra.mxu0 0
    %204 = vmatprep.subr.bf16.mxu0 0
    %205 = vmatpush1.bf16.xpose.msra.mxu0 0
    %206 = vmatprep.subr.bf16.mxu0 0
    %207 = vmatpush1.bf16.xpose.msra.mxu0 0
    %208 = vmatprep.subr.bf16.mxu0 0
    %209 = vmatpush1.bf16.xpose.msra.mxu0 0
    %210 = vmatprep.subr.bf16.mxu0 0
    %211 = vmatpush1.bf16.xpose.msra.mxu0 0
    %212 = vmatprep.subr.bf16.mxu0 0
    %213 = vmatpush1.bf16.xpose.msra.mxu0 0
    %214 = vmatprep.subr.bf16.mxu0 0
    %215 = vmatpush1.bf16.xpose.msra.mxu0 0
    %216 = vmatprep.subr.bf16.mxu0 0
    %217 = vmatpush1.bf16.xpose.msra.mxu0 0
    %218 = vmatprep.subr.bf16.mxu0 0
    %219 = vmatpush1.bf16.xpose.msra.mxu0 0
    %220 = vmatprep.subr.bf16.mxu0 0
    %221 = vmatpush1.bf16.xpose.msra.mxu0 0
    %222 = vmatprep.subr.bf16.mxu0 0
    %223 = vmatpush1.bf16.xpose.msra.mxu0 0
    %224 = vmatprep.mubr.bf16.mxu0 0
    %225 = vmatmul.mubr.bf16.gmra.mrb[0].mxu0 %v187
    %v226 = vpop.f32.mrb[0].mxu0
    %v227 = vadd.f32 0.0, %v226
    %v228 = vpop.f32.mrb[0].mxu0
    %v229 = vpop.f32.mrb[0].mxu0
    %v230 = vpop.f32.mrb[0].mxu0
    %231 = vdwg.mxu0
    %vm232 = vcmask 64512
    %v233 = vsel %vm232, %v178, -inf
    %v234 = vrot.slane %v233, 4
    %v235 = vmax.f32 %v233, %v234
    %v236 = vrot.slane %v235, 2
    %v237 = vmax.f32 %v235, %v236
    %v238 = vrot.slane %v237, 1
    %v239 = vmax.f32 %v237, %v238
    %v240 = vsel %vm232, %v227, -inf
    %v241 = vrot.slane %v240, 4
    %v242 = vmax.f32 %v240, %v241
    %v243 = vrot.slane %v242, 2
    %v244 = vmax.f32 %v242, %v243
    %v245 = vrot.slane %v244, 1
    %v246 = vmax.f32 %v244, %v245
    %v247 = vsub.f32 %v178, %v239
    %v248 = vsub.f32 %v227, %v246
    %v249 = vmul.f32 %v247, 1.442695
    %v250 = vpow.pop %v249
    %v251 = vmul.f32 %v248, 1.442695
    %v252 = vpow.pop %v251
    %v253 = vsel %vm232, %v250, 0.0
    %v254 = vrot.slane %v253, 4
    %v255 = vadd.f32 %v253, %v254
    %v256 = vrot.slane %v255, 2
    %v257 = vadd.f32 %v255, %v256
    %v258 = vrot.slane %v257, 1
    %v259 = vadd.f32 %v257, %v258
    %v260 = vsel %vm232, %v252, 0.0
    %v261 = vrot.slane %v260, 4
    %v262 = vadd.f32 %v260, %v261
    %v263 = vrot.slane %v262, 2
    %v264 = vadd.f32 %v262, %v263
    %v265 = vrot.slane %v264, 1
    %v266 = vadd.f32 %v264, %v265
    %v267 = vrcp.pop %v259
    %v268 = vrcp.pop %v266
    %v269 = vmul.f32 %v250, %v267
    %v270 = vmul.f32 %v252, %v268
    %v271 = vpack.c.bf16 %v269, %v269
    %v272 = vpack.c.bf16 %v270, %v270
    %273 = vrot.lane.b32.xlu0 %v133, 96
    %v274 = vpop.permute.xlu0 %273
    %v276 = vsel %vm232, %v271, 0
    %vm278 = vcmask 1043456
    %v280 = vsel %vm278, %v274, 0
    %282 = vmatprep.subr.bf16.mxu0 0
    %283 = vmatpush1.bf16.msra.mxu0 %v280
    %284 = vmatprep.subr.bf16.mxu0 0
    %285 = vmatpush1.bf16.msra.mxu0 0
    %286 = vmatprep.subr.bf16.mxu0 0
    %287 = vmatpush1.bf16.msra.mxu0 0
    %288 = vmatprep.subr.bf16.mxu0 0
    %289 = vmatpush1.bf16.msra.mxu0 0
    %290 = vmatprep.subr.bf16.mxu0 0
    %291 = vmatpush1.bf16.msra.mxu0 0
    %292 = vmatprep.subr.bf16.mxu0 0
    %293 = vmatpush1.bf16.msra.mxu0 0
    %294 = vmatprep.subr.bf16.mxu0 0
    %295 = vmatpush1.bf16.msra.mxu0 0
    %296 = vmatprep.subr.bf16.mxu0 0
    %297 = vmatpush1.bf16.msra.mxu0 0
    %298 = vmatprep.subr.bf16.mxu0 0
    %299 = vmatpush1.bf16.msra.mxu0 0
    %300 = vmatprep.subr.bf16.mxu0 0
    %301 = vmatpush1.bf16.msra.mxu0 0
    %302 = vmatprep.subr.bf16.mxu0 0
    %303 = vmatpush1.bf16.msra.mxu0 0
    %304 = vmatprep.subr.bf16.mxu0 0
    %305 = vmatpush1.bf16.msra.mxu0 0
    %306 = vmatprep.subr.bf16.mxu0 0
    %307 = vmatpush1.bf16.msra.mxu0 0
    %308 = vmatprep.subr.bf16.mxu0 0
    %309 = vmatpush1.bf16.msra.mxu0 0
    %310 = vmatprep.subr.bf16.mxu0 0
    %311 = vmatpush1.bf16.msra.mxu0 0
    %312 = vmatprep.subr.bf16.mxu0 0
    %313 = vmatpush1.bf16.msra.mxu0 0
    %314 = vmatprep.mubr.bf16.mxu0 0
    %315 = vmatmul.mubr.bf16.gmra.mrb[0].mxu0 %v276
    %v316 = vpop.f32.mrb[0].mxu0
    %v317 = vadd.f32 0.0, %v316
    %v318 = vpop.f32.mrb[0].mxu0
    %v319 = vpop.f32.mrb[0].mxu0
    %v320 = vpop.f32.mrb[0].mxu0
    %321 = vdwg.mxu0
    %322 = vrot.lane.b32.xlu0 %v183, 96
    %v323 = vpop.permute.xlu0 %322
    %v325 = vsel %vm232, %v272, 0
    %v328 = vsel %vm278, %v323, 0
    %330 = vmatprep.subr.bf16.mxu0 0
    %331 = vmatpush1.bf16.msra.mxu0 %v328
    %332 = vmatprep.subr.bf16.mxu0 0
    %333 = vmatpush1.bf16.msra.mxu0 0
    %334 = vmatprep.subr.bf16.mxu0 0
    %335 = vmatpush1.bf16.msra.mxu0 0
    %336 = vmatprep.subr.bf16.mxu0 0
    %337 = vmatpush1.bf16.msra.mxu0 0
    %338 = vmatprep.subr.bf16.mxu0 0
    %339 = vmatpush1.bf16.msra.mxu0 0
    %340 = vmatprep.subr.bf16.mxu0 0
    %341 = vmatpush1.bf16.msra.mxu0 0
    %342 = vmatprep.subr.bf16.mxu0 0
    %343 = vmatpush1.bf16.msra.mxu0 0
    %344 = vmatprep.subr.bf16.mxu0 0
    %345 = vmatpush1.bf16.msra.mxu0 0
    %346 = vmatprep.subr.bf16.mxu0 0
    %347 = vmatpush1.bf16.msra.mxu0 0
    %348 = vmatprep.subr.bf16.mxu0 0
    %349 = vmatpush1.bf16.msra.mxu0 0
    %350 = vmatprep.subr.bf16.mxu0 0
    %351 = vmatpush1.bf16.msra.mxu0 0
    %352 = vmatprep.subr.bf16.mxu0 0
    %353 = vmatpush1.bf16.msra.mxu0 0
    %354 = vmatprep.subr.bf16.mxu0 0
    %355 = vmatpush1.bf16.msra.mxu0 0
    %356 = vmatprep.subr.bf16.mxu0 0
    %357 = vmatpush1.bf16.msra.mxu0 0
    %358 = vmatprep.subr.bf16.mxu0 0
    %359 = vmatpush1.bf16.msra.mxu0 0
    %360 = vmatprep.subr.bf16.mxu0 0
    %361 = vmatpush1.bf16.msra.mxu0 0
    %362 = vmatprep.mubr.bf16.mxu0 0
    %363 = vmatmul.mubr.bf16.gmra.mrb[0].mxu0 %v325
    %v364 = vpop.f32.mrb[0].mxu0
    %v365 = vadd.f32 0.0, %v364
    %v366 = vpop.f32.mrb[0].mxu0
    %v367 = vpop.f32.mrb[0].mxu0
    %v368 = vpop.f32.mrb[0].mxu0
    %369 = vdwg.mxu0
    %v370 = vpack.c.bf16 %v365, %v317
    %v371 = vld [vmem:[%s3] sm:$0xf]
    %v372 = vld [vmem:[%s3 + $0x4] sm:$0xf]
    %v373 = vld [vmem:[%s4] sm:$0x1]
    %v375 = vlaneseq
    %v376 = vshrl.u32 %v375, 7
    %v377 = vsub.s32 0, %v376
    %v378 = vrot.slane %v373, %v377
    %v382 = vunpack.c.l.b16 %v371
    %v383 = vunpack.c.l.b16 %v372
    %v384 = vpack.c.b16 %v383, %v382
    %v387 = vsel %vm136, %v370, 0
    %389 = vmatprep.subr.bf16.mxu0 0
    %390 = vmatpush1.bf16.msra.mxu0 %v384
    %391 = vmatprep.subr.bf16.mxu0 0
    %392 = vmatpush1.bf16.msra.mxu0 0
    %393 = vmatprep.subr.bf16.mxu0 0
    %394 = vmatpush1.bf16.msra.mxu0 0
    %395 = vmatprep.subr.bf16.mxu0 0
    %396 = vmatpush1.bf16.msra.mxu0 0
    %397 = vmatprep.subr.bf16.mxu0 0
    %398 = vmatpush1.bf16.msra.mxu0 0
    %399 = vmatprep.subr.bf16.mxu0 0
    %400 = vmatpush1.bf16.msra.mxu0 0
    %401 = vmatprep.subr.bf16.mxu0 0
    %402 = vmatpush1.bf16.msra.mxu0 0
    %403 = vmatprep.subr.bf16.mxu0 0
    %404 = vmatpush1.bf16.msra.mxu0 0
    %405 = vmatprep.subr.bf16.mxu0 0
    %406 = vmatpush1.bf16.msra.mxu0 0
    %407 = vmatprep.subr.bf16.mxu0 0
    %408 = vmatpush1.bf16.msra.mxu0 0
    %409 = vmatprep.subr.bf16.mxu0 0
    %410 = vmatpush1.bf16.msra.mxu0 0
    %411 = vmatprep.subr.bf16.mxu0 0
    %412 = vmatpush1.bf16.msra.mxu0 0
    %413 = vmatprep.subr.bf16.mxu0 0
    %414 = vmatpush1.bf16.msra.mxu0 0
    %415 = vmatprep.subr.bf16.mxu0 0
    %416 = vmatpush1.bf16.msra.mxu0 0
    %417 = vmatprep.subr.bf16.mxu0 0
    %418 = vmatpush1.bf16.msra.mxu0 0
    %419 = vmatprep.subr.bf16.mxu0 0
    %420 = vmatpush1.bf16.msra.mxu0 0
    %421 = vmatprep.mubr.bf16.mxu0 0
    %422 = vmatmul.mubr.bf16.gmra.mrb[0].mxu0 %v387
    %v423 = vpop.f32.mrb[0].mxu0
    %v424 = vadd.f32 %v378, %v423
    %v425 = vpop.f32.mrb[0].mxu0
    %v426 = vpop.f32.mrb[0].mxu0
    %v427 = vadd.f32 %v378, %v426
    %v428 = vpop.f32.mrb[0].mxu0
    %429 = vdwg.mxu0
    %430 = vst.msk [vmem:[#allocation7] sm:$0xff] %vm76, %v424
    %431 = vst.msk [vmem:[#allocation7 + $0x8] sm:$0xff] %vm76, %v427
    // Predicated region
    $region30: #{tpu_custom_call.1} parent=1 // pred_check
      _
    $region31: #{tpu_custom_call.1} parent=1 // pred_check_branch
      %433 = sbr.rel (0) target = $region33
    $region32: #{tpu_custom_call.1} parent=1 // pred_region
      %s435 = ssub.s32 256, 256
      %436 = vsyncadd [#allocation4], %s435
      %s437 = sshll.u32 [#allocation7], 4
      %s438 = int_to_ptr.vmem [resolvable:$true] %s437
      %443 = dma.vmem_to_hbm [thread:$0]  %s438, 256, %s5, [#allocation4], 128, 128, 8
    $region33: #{tpu_custom_call.1} parent=1 // pred_fallthru
      _
    // Predicated region
    $region34: #{tpu_custom_call.1} parent=1 // pred_check
      _
    $region35: #{tpu_custom_call.1} parent=1 // pred_check_branch
      %445 = sbr.rel (0) target = $region37
    $region36: #{tpu_custom_call.1} parent=1 // pred_region
      %446 = dma.done [#allocation4], 256
    $region37: #{tpu_custom_call.1} parent=1 // pred_fallthru
      _
    %447 = vsyncpa [#allocation3], 1
    %448 = vsyncpa [#allocation6], 1
    %449 = vsyncpa [#allocation4], 1

</llo_original>
